<compile_context>
chip_gen: v5e
topology: v5e:2x2
jax: 0.10.0
libtpu: 0.0.40
codegen_flags: <defaults>
</compile_context>

<pallas_src>
import jax
import jax.numpy as jnp
from jax import lax
from jax.experimental import pallas as pl
from jax.experimental.pallas import tpu as pltpu


def _round_up(x, m):
    return pl.cdiv(x, m) * m


def _flow_stack_kernel(z_ref, w1_ref, b1_ref, w2s_ref, b2s_ref, w2t_ref,
                       b2t_ref, out_ref):
    """Applies all L coupling layers to one batch tile (weights VMEM-resident)."""
    num_layers = w1_ref.shape[0]
    z = z_ref[...].astype(jnp.float32)                       # (bt, Dp) f32

    # Static unrolled layer loop (L is a compile-time constant, weights tiny).
    for l in range(num_layers):
        zb = z.astype(jnp.bfloat16)
        # Conditioner MLP: bf16 MXU inputs, f32 accumulation, f32 tanh (EUP).
        h = jnp.tanh(
            jnp.dot(zb, w1_ref[l], preferred_element_type=jnp.float32)
            + b1_ref[l]
        )                                                     # (bt, Hp) f32
        hb = h.astype(jnp.bfloat16)
        # Scale / shift already carry the (1 - mask) factor (folded in wrapper).
        s = jnp.dot(hb, w2s_ref[l], preferred_element_type=jnp.float32) + b2s_ref[l]
        t = jnp.dot(hb, w2t_ref[l], preferred_element_type=jnp.float32) + b2t_ref[l]
        # Masked dims: s == 0, t == 0  ->  z * exp(0) + 0 == z  (identity).
        # NOTE: exp(s) unclamped, matching the reference formulation.
        z = z * jnp.exp(s) + t

    out_ref[...] = z.astype(out_ref.dtype)


@jax.jit
def context_normalizing_flow_forward(z, W1, b1, W2, b2, masks):
    """Applies the whole flow stack inside a single pallas_call.

    z:     (B, D) float32
    W1:    (L, D, H)    b1: (L, 1, H)
    W2:    (L, H, 2D)   b2: (L, 1, 2D)
    masks: (L, 1, D)    binary (1 = conditioning / identity dims)
    """
    B, D = z.shape
    L, _, H = W1.shape

    # ---- fold masks into the parameters at trace time (masks are 0/1) ----
    m = masks[:, 0, :]                      # (L, D)
    one_m = 1.0 - m
    W1m = W1 * m[:, :, None]                # zm @ W1 == z @ (mask * W1)
    W2s = W2[:, :, :D] * one_m[:, None, :]  # (L, H, D)  scale columns, masked
    W2t = W2[:, :, D:] * one_m[:, None, :]  # (L, H, D)  shift columns, masked
    b2s = b2[:, :, :D] * one_m[:, None, :]  # (L, 1, D)
    b2t = b2[:, :, D:] * one_m[:, None, :]  # (L, 1, D)

    # ---- pad to lane/sublane-friendly shapes ----
    Dp = _round_up(D, 128)
    Hp = _round_up(H, 128)
    bt = min(256, _round_up(B, 8))          # batch tile (multiple of 8 rows)
    Bp = _round_up(B, bt)

    def pad_last2(x, r, c):
        return jnp.pad(x, ((0, 0), (0, r - x.shape[1]), (0, c - x.shape[2])))

    zp = jnp.pad(z, ((0, Bp - B), (0, Dp - D))).astype(jnp.float32)
    # Weights streamed/held as bf16 (MXU-native, half the DMA bytes);
    # biases stay f32 (added after the f32-accumulated dot).
    W1p = pad_last2(W1m, Dp, Hp).astype(jnp.bfloat16)
    W2sp = pad_last2(W2s, Hp, Dp).astype(jnp.bfloat16)
    W2tp = pad_last2(W2t, Hp, Dp).astype(jnp.bfloat16)
    b1p = pad_last2(b1, 1, Hp).astype(jnp.float32)
    b2sp = pad_last2(b2s, 1, Dp).astype(jnp.float32)
    b2tp = pad_last2(b2t, 1, Dp).astype(jnp.float32)

    # ---- VMEM budget (double-buffered inputs + output + f32 temporaries) ----
    in_bytes = (
        W1p.size * 2 + W2sp.size * 2 + W2tp.size * 2
        + (b1p.size + b2sp.size + b2tp.size) * 4
        + bt * Dp * 4
    )
    out_bytes = bt * Dp * 4
    tmp_bytes = 4 * bt * (Dp + Hp) * 4
    vmem_limit = int(min(max(2 * (in_bytes + out_bytes) + tmp_bytes, 32 << 20),
                         64 << 20))

    grid = (Bp // bt,)

    out_padded = pl.pallas_call(
        _flow_stack_kernel,
        out_shape=jax.ShapeDtypeStruct((Bp, Dp), jnp.float32),
        grid_spec=pltpu.PrefetchScalarGridSpec(
            num_scalar_prefetch=0,
            grid=grid,
            in_specs=[
                pl.BlockSpec((bt, Dp), lambda i: (i, 0)),        # z batch tile
                pl.BlockSpec((L, Dp, Hp), lambda i: (0, 0, 0)),  # W1  (resident)
                pl.BlockSpec((L, 1, Hp), lambda i: (0, 0, 0)),   # b1
                pl.BlockSpec((L, Hp, Dp), lambda i: (0, 0, 0)),  # W2_s
                pl.BlockSpec((L, 1, Dp), lambda i: (0, 0, 0)),   # b2_s
                pl.BlockSpec((L, Hp, Dp), lambda i: (0, 0, 0)),  # W2_t
                pl.BlockSpec((L, 1, Dp), lambda i: (0, 0, 0)),   # b2_t
            ],
            out_specs=pl.BlockSpec((bt, Dp), lambda i: (i, 0)),
        ),
        input_output_aliases={0: 0},   # reuse z's (padded) buffer for the output
        compiler_params=pltpu.CompilerParams(
            dimension_semantics=("parallel",),
            vmem_limit_bytes=vmem_limit,
        ),
    )(zp, W1p, b1p, W2sp, b2sp, W2tp, b2tp)

    return out_padded[:B, :D]


def reference_forward_f32(z, W1, b1, W2, b2, masks):
    """Pure-JAX f32 reference for the same flow stack."""
    d = z.shape[1]
    for l in range(W1.shape[0]):
        m = masks[l]                                   # (1, D)
        one_m = 1.0 - m
        zm = z * m
        h = jnp.tanh(jnp.dot(zm, W1[l], precision=lax.Precision.HIGHEST) + b1[l])
        st = jnp.dot(h, W2[l], precision=lax.Precision.HIGHEST) + b2[l]
        s = st[:, :d] * one_m
        t = st[:, d:] * one_m
        z = zm + one_m * (z * jnp.exp(s) + t)
    return z


def reference_forward_bf16(z, W1, b1, W2, b2, masks):
    """Pure-JAX reference mirroring the kernel's bf16-input / f32-accum math."""
    d = z.shape[1]
    for l in range(W1.shape[0]):
        m = masks[l]
        one_m = 1.0 - m
        zm = z * m
        h = jnp.tanh(
            jnp.dot(zm.astype(jnp.bfloat16), W1[l].astype(jnp.bfloat16),
                    preferred_element_type=jnp.float32) + b1[l]
        )
        st = jnp.dot(h.astype(jnp.bfloat16), W2[l].astype(jnp.bfloat16),
                     preferred_element_type=jnp.float32) + b2[l]
        s = st[:, :d] * one_m
        t = st[:, d:] * one_m
        z = zm + one_m * (z * jnp.exp(s) + t)
    return z


def make_params(key, L, D, H):
    keys = jax.random.split(key, 4)
    W1 = 0.1 * jax.random.normal(keys[0], (L, D, H), dtype=jnp.float32)
    b1 = 0.1 * jax.random.normal(keys[1], (L, 1, H), dtype=jnp.float32)
    W2 = 0.1 * jax.random.normal(keys[2], (L, H, 2 * D), dtype=jnp.float32)
    b2 = 0.1 * jax.random.normal(keys[3], (L, 1, 2 * D), dtype=jnp.float32)
    # Alternating binary masks: layer l keeps dims where (j + l) % 2 == 0.
    j = jnp.arange(D)
    masks = jnp.stack(
        [((j + l) % 2 == 0).astype(jnp.float32).reshape(1, D) for l in range(L)],
        axis=0,
    )
    return W1, b1, W2, b2, masks


if __name__ == "__main__":
    B, D, H, L = 8, 8, 32, 4

    key = jax.random.PRNGKey(0)
    k_z, k_p = jax.random.split(key)
    z = jax.random.normal(k_z, (B, D), dtype=jnp.float32)
    W1, b1, W2, b2, masks = make_params(k_p, L, D, H)

    out = context_normalizing_flow_forward(z, W1, b1, W2, b2, masks)
    out = jax.block_until_ready(out)

    ref_bf16 = reference_forward_bf16(z, W1, b1, W2, b2, masks)
    ref_f32 = reference_forward_f32(z, W1, b1, W2, b2, masks)

    assert out.shape == (B, D)
    # Tight check against a reference using the same bf16-input matmul math.
    assert jnp.allclose(out, ref_bf16, rtol=1e-3, atol=1e-3), \
        "mismatch vs bf16-math JAX reference"
    # Loose sanity check against the full-f32 reference.
    assert jnp.allclose(out, ref_f32, rtol=5e-2, atol=5e-2), \
        "mismatch vs f32 JAX reference"

    print("KERNEL_OK")
</pallas_src>

<mosaic_0001>
module attributes {stable_mosaic.version = 11 : i64} {
  func.func @_flow_stack_kernel(%arg0: i32, %arg1: memref<8x128xf32, #tpu.memory_space<vmem>>, %arg2: memref<4x128x128xbf16, #tpu.memory_space<vmem>>, %arg3: memref<4x1x128xf32, #tpu.memory_space<vmem>>, %arg4: memref<4x128x128xbf16, #tpu.memory_space<vmem>>, %arg5: memref<4x1x128xf32, #tpu.memory_space<vmem>>, %arg6: memref<4x128x128xbf16, #tpu.memory_space<vmem>>, %arg7: memref<4x1x128xf32, #tpu.memory_space<vmem>>, %arg8: memref<8x128xf32, #tpu.memory_space<vmem>>) attributes {dimension_semantics = [#tpu.dimension_semantics<parallel>], iteration_bounds = array<i64: 1>, scalar_prefetch = 0 : i64, scratch_operands = 0 : i64, tpu.core_type = #tpu.core_type<tc>, window_params = [{transform_indices = @transform_0, window_bounds = array<i64: 8, 128>}, {pipeline_mode = #tpu.pipeline_mode<synchronous>, transform_indices = @transform_1, window_bounds = array<i64: 4, 128, 128>}, {pipeline_mode = #tpu.pipeline_mode<synchronous>, transform_indices = @transform_2, window_bounds = array<i64: 4, 1, 128>}, {pipeline_mode = #tpu.pipeline_mode<synchronous>, transform_indices = @transform_3, window_bounds = array<i64: 4, 128, 128>}, {pipeline_mode = #tpu.pipeline_mode<synchronous>, transform_indices = @transform_4, window_bounds = array<i64: 4, 1, 128>}, {pipeline_mode = #tpu.pipeline_mode<synchronous>, transform_indices = @transform_5, window_bounds = array<i64: 4, 128, 128>}, {pipeline_mode = #tpu.pipeline_mode<synchronous>, transform_indices = @transform_6, window_bounds = array<i64: 4, 1, 128>}, {transform_indices = @transform_7, window_bounds = array<i64: 8, 128>}]} {
    %c0 = arith.constant 0 : index
    %c0_0 = arith.constant 0 : index
    %0 = vector.load %arg1[%c0, %c0_0] : memref<8x128xf32, #tpu.memory_space<vmem>>, vector<8x128xf32>
    %1 = arith.truncf %0 : vector<8x128xf32> to vector<8x128xbf16>
    %c0_1 = arith.constant 0 : index
    %c0_2 = arith.constant 0 : index
    %c0_3 = arith.constant 0 : index
    %2 = vector.load %arg2[%c0_1, %c0_2, %c0_3] : memref<4x128x128xbf16, #tpu.memory_space<vmem>>, vector<1x128x128xbf16>
    %3 = vector.shape_cast %2 : vector<1x128x128xbf16> to vector<128x128xbf16>
    %cst = arith.constant dense<0.000000e+00> : vector<8x128xf32>
    %4 = tpu.matmul %1, %3, %cst {dimension_numbers = #tpu.dot_dimension_numbers<[1], [0], [0], [1], [0, 0, 1, 1], [], []>} : vector<8x128xbf16>, vector<128x128xbf16>, vector<8x128xf32> -> vector<8x128xf32>
    %c0_4 = arith.constant 0 : index
    %c0_5 = arith.constant 0 : index
    %c0_6 = arith.constant 0 : index
    %5 = vector.load %arg3[%c0_4, %c0_5, %c0_6] : memref<4x1x128xf32, #tpu.memory_space<vmem>>, vector<1x1x128xf32>
    %6 = vector.shape_cast %5 : vector<1x1x128xf32> to vector<1x128xf32>
    %7 = vector.broadcast %6 : vector<1x128xf32> to vector<8x128xf32>
    %8 = arith.addf %4, %7 : vector<8x128xf32>
    %9 = math.tanh %8 : vector<8x128xf32>
    %10 = arith.truncf %9 : vector<8x128xf32> to vector<8x128xbf16>
    %c0_7 = arith.constant 0 : index
    %c0_8 = arith.constant 0 : index
    %c0_9 = arith.constant 0 : index
    %11 = vector.load %arg4[%c0_7, %c0_8, %c0_9] : memref<4x128x128xbf16, #tpu.memory_space<vmem>>, vector<1x128x128xbf16>
    %12 = vector.shape_cast %11 : vector<1x128x128xbf16> to vector<128x128xbf16>
    %cst_10 = arith.constant dense<0.000000e+00> : vector<8x128xf32>
    %13 = tpu.matmul %10, %12, %cst_10 {dimension_numbers = #tpu.dot_dimension_numbers<[1], [0], [0], [1], [0, 0, 1, 1], [], []>} : vector<8x128xbf16>, vector<128x128xbf16>, vector<8x128xf32> -> vector<8x128xf32>
    %c0_11 = arith.constant 0 : index
    %c0_12 = arith.constant 0 : index
    %c0_13 = arith.constant 0 : index
    %14 = vector.load %arg5[%c0_11, %c0_12, %c0_13] : memref<4x1x128xf32, #tpu.memory_space<vmem>>, vector<1x1x128xf32>
    %15 = vector.shape_cast %14 : vector<1x1x128xf32> to vector<1x128xf32>
    %16 = vector.broadcast %15 : vector<1x128xf32> to vector<8x128xf32>
    %17 = arith.addf %13, %16 : vector<8x128xf32>
    %c0_14 = arith.constant 0 : index
    %c0_15 = arith.constant 0 : index
    %c0_16 = arith.constant 0 : index
    %18 = vector.load %arg6[%c0_14, %c0_15, %c0_16] : memref<4x128x128xbf16, #tpu.memory_space<vmem>>, vector<1x128x128xbf16>
    %19 = vector.shape_cast %18 : vector<1x128x128xbf16> to vector<128x128xbf16>
    %cst_17 = arith.constant dense<0.000000e+00> : vector<8x128xf32>
    %20 = tpu.matmul %10, %19, %cst_17 {dimension_numbers = #tpu.dot_dimension_numbers<[1], [0], [0], [1], [0, 0, 1, 1], [], []>} : vector<8x128xbf16>, vector<128x128xbf16>, vector<8x128xf32> -> vector<8x128xf32>
    %c0_18 = arith.constant 0 : index
    %c0_19 = arith.constant 0 : index
    %c0_20 = arith.constant 0 : index
    %21 = vector.load %arg7[%c0_18, %c0_19, %c0_20] : memref<4x1x128xf32, #tpu.memory_space<vmem>>, vector<1x1x128xf32>
    %22 = vector.shape_cast %21 : vector<1x1x128xf32> to vector<1x128xf32>
    %23 = vector.broadcast %22 : vector<1x128xf32> to vector<8x128xf32>
    %24 = arith.addf %20, %23 : vector<8x128xf32>
    %25 = math.exp %17 : vector<8x128xf32>
    %26 = arith.mulf %0, %25 : vector<8x128xf32>
    %27 = arith.addf %26, %24 : vector<8x128xf32>
    %28 = arith.truncf %27 : vector<8x128xf32> to vector<8x128xbf16>
    %c1 = arith.constant 1 : index
    %c0_21 = arith.constant 0 : index
    %c0_22 = arith.constant 0 : index
    %29 = vector.load %arg2[%c1, %c0_21, %c0_22] : memref<4x128x128xbf16, #tpu.memory_space<vmem>>, vector<1x128x128xbf16>
    %30 = vector.shape_cast %29 : vector<1x128x128xbf16> to vector<128x128xbf16>
    %cst_23 = arith.constant dense<0.000000e+00> : vector<8x128xf32>
    %31 = tpu.matmul %28, %30, %cst_23 {dimension_numbers = #tpu.dot_dimension_numbers<[1], [0], [0], [1], [0, 0, 1, 1], [], []>} : vector<8x128xbf16>, vector<128x128xbf16>, vector<8x128xf32> -> vector<8x128xf32>
    %c1_24 = arith.constant 1 : index
    %c0_25 = arith.constant 0 : index
    %c0_26 = arith.constant 0 : index
    %32 = vector.load %arg3[%c1_24, %c0_25, %c0_26] : memref<4x1x128xf32, #tpu.memory_space<vmem>>, vector<1x1x128xf32>
    %33 = vector.shape_cast %32 : vector<1x1x128xf32> to vector<1x128xf32>
    %34 = vector.broadcast %33 : vector<1x128xf32> to vector<8x128xf32>
    %35 = arith.addf %31, %34 : vector<8x128xf32>
    %36 = math.tanh %35 : vector<8x128xf32>
    %37 = arith.truncf %36 : vector<8x128xf32> to vector<8x128xbf16>
    %c1_27 = arith.constant 1 : index
    %c0_28 = arith.constant 0 : index
    %c0_29 = arith.constant 0 : index
    %38 = vector.load %arg4[%c1_27, %c0_28, %c0_29] : memref<4x128x128xbf16, #tpu.memory_space<vmem>>, vector<1x128x128xbf16>
    %39 = vector.shape_cast %38 : vector<1x128x128xbf16> to vector<128x128xbf16>
    %cst_30 = arith.constant dense<0.000000e+00> : vector<8x128xf32>
    %40 = tpu.matmul %37, %39, %cst_30 {dimension_numbers = #tpu.dot_dimension_numbers<[1], [0], [0], [1], [0, 0, 1, 1], [], []>} : vector<8x128xbf16>, vector<128x128xbf16>, vector<8x128xf32> -> vector<8x128xf32>
    %c1_31 = arith.constant 1 : index
    %c0_32 = arith.constant 0 : index
    %c0_33 = arith.constant 0 : index
    %41 = vector.load %arg5[%c1_31, %c0_32, %c0_33] : memref<4x1x128xf32, #tpu.memory_space<vmem>>, vector<1x1x128xf32>
    %42 = vector.shape_cast %41 : vector<1x1x128xf32> to vector<1x128xf32>
    %43 = vector.broadcast %42 : vector<1x128xf32> to vector<8x128xf32>
    %44 = arith.addf %40, %43 : vector<8x128xf32>
    %c1_34 = arith.constant 1 : index
    %c0_35 = arith.constant 0 : index
    %c0_36 = arith.constant 0 : index
    %45 = vector.load %arg6[%c1_34, %c0_35, %c0_36] : memref<4x128x128xbf16, #tpu.memory_space<vmem>>, vector<1x128x128xbf16>
    %46 = vector.shape_cast %45 : vector<1x128x128xbf16> to vector<128x128xbf16>
    %cst_37 = arith.constant dense<0.000000e+00> : vector<8x128xf32>
    %47 = tpu.matmul %37, %46, %cst_37 {dimension_numbers = #tpu.dot_dimension_numbers<[1], [0], [0], [1], [0, 0, 1, 1], [], []>} : vector<8x128xbf16>, vector<128x128xbf16>, vector<8x128xf32> -> vector<8x128xf32>
    %c1_38 = arith.constant 1 : index
    %c0_39 = arith.constant 0 : index
    %c0_40 = arith.constant 0 : index
    %48 = vector.load %arg7[%c1_38, %c0_39, %c0_40] : memref<4x1x128xf32, #tpu.memory_space<vmem>>, vector<1x1x128xf32>
    %49 = vector.shape_cast %48 : vector<1x1x128xf32> to vector<1x128xf32>
    %50 = vector.broadcast %49 : vector<1x128xf32> to vector<8x128xf32>
    %51 = arith.addf %47, %50 : vector<8x128xf32>
    %52 = math.exp %44 : vector<8x128xf32>
    %53 = arith.mulf %27, %52 : vector<8x128xf32>
    %54 = arith.addf %53, %51 : vector<8x128xf32>
    %55 = arith.truncf %54 : vector<8x128xf32> to vector<8x128xbf16>
    %c2 = arith.constant 2 : index
    %c0_41 = arith.constant 0 : index
    %c0_42 = arith.constant 0 : index
    %56 = vector.load %arg2[%c2, %c0_41, %c0_42] : memref<4x128x128xbf16, #tpu.memory_space<vmem>>, vector<1x128x128xbf16>
    %57 = vector.shape_cast %56 : vector<1x128x128xbf16> to vector<128x128xbf16>
    %cst_43 = arith.constant dense<0.000000e+00> : vector<8x128xf32>
    %58 = tpu.matmul %55, %57, %cst_43 {dimension_numbers = #tpu.dot_dimension_numbers<[1], [0], [0], [1], [0, 0, 1, 1], [], []>} : vector<8x128xbf16>, vector<128x128xbf16>, vector<8x128xf32> -> vector<8x128xf32>
    %c2_44 = arith.constant 2 : index
    %c0_45 = arith.constant 0 : index
    %c0_46 = arith.constant 0 : index
    %59 = vector.load %arg3[%c2_44, %c0_45, %c0_46] : memref<4x1x128xf32, #tpu.memory_space<vmem>>, vector<1x1x128xf32>
    %60 = vector.shape_cast %59 : vector<1x1x128xf32> to vector<1x128xf32>
    %61 = vector.broadcast %60 : vector<1x128xf32> to vector<8x128xf32>
    %62 = arith.addf %58, %61 : vector<8x128xf32>
    %63 = math.tanh %62 : vector<8x128xf32>
    %64 = arith.truncf %63 : vector<8x128xf32> to vector<8x128xbf16>
    %c2_47 = arith.constant 2 : index
    %c0_48 = arith.constant 0 : index
    %c0_49 = arith.constant 0 : index
    %65 = vector.load %arg4[%c2_47, %c0_48, %c0_49] : memref<4x128x128xbf16, #tpu.memory_space<vmem>>, vector<1x128x128xbf16>
    %66 = vector.shape_cast %65 : vector<1x128x128xbf16> to vector<128x128xbf16>
    %cst_50 = arith.constant dense<0.000000e+00> : vector<8x128xf32>
    %67 = tpu.matmul %64, %66, %cst_50 {dimension_numbers = #tpu.dot_dimension_numbers<[1], [0], [0], [1], [0, 0, 1, 1], [], []>} : vector<8x128xbf16>, vector<128x128xbf16>, vector<8x128xf32> -> vector<8x128xf32>
    %c2_51 = arith.constant 2 : index
    %c0_52 = arith.constant 0 : index
    %c0_53 = arith.constant 0 : index
    %68 = vector.load %arg5[%c2_51, %c0_52, %c0_53] : memref<4x1x128xf32, #tpu.memory_space<vmem>>, vector<1x1x128xf32>
    %69 = vector.shape_cast %68 : vector<1x1x128xf32> to vector<1x128xf32>
    %70 = vector.broadcast %69 : vector<1x128xf32> to vector<8x128xf32>
    %71 = arith.addf %67, %70 : vector<8x128xf32>
    %c2_54 = arith.constant 2 : index
    %c0_55 = arith.constant 0 : index
    %c0_56 = arith.constant 0 : index
    %72 = vector.load %arg6[%c2_54, %c0_55, %c0_56] : memref<4x128x128xbf16, #tpu.memory_space<vmem>>, vector<1x128x128xbf16>
    %73 = vector.shape_cast %72 : vector<1x128x128xbf16> to vector<128x128xbf16>
    %cst_57 = arith.constant dense<0.000000e+00> : vector<8x128xf32>
    %74 = tpu.matmul %64, %73, %cst_57 {dimension_numbers = #tpu.dot_dimension_numbers<[1], [0], [0], [1], [0, 0, 1, 1], [], []>} : vector<8x128xbf16>, vector<128x128xbf16>, vector<8x128xf32> -> vector<8x128xf32>
    %c2_58 = arith.constant 2 : index
    %c0_59 = arith.constant 0 : index
    %c0_60 = arith.constant 0 : index
    %75 = vector.load %arg7[%c2_58, %c0_59, %c0_60] : memref<4x1x128xf32, #tpu.memory_space<vmem>>, vector<1x1x128xf32>
    %76 = vector.shape_cast %75 : vector<1x1x128xf32> to vector<1x128xf32>
    %77 = vector.broadcast %76 : vector<1x128xf32> to vector<8x128xf32>
    %78 = arith.addf %74, %77 : vector<8x128xf32>
    %79 = math.exp %71 : vector<8x128xf32>
    %80 = arith.mulf %54, %79 : vector<8x128xf32>
    %81 = arith.addf %80, %78 : vector<8x128xf32>
    %82 = arith.truncf %81 : vector<8x128xf32> to vector<8x128xbf16>
    %c3 = arith.constant 3 : index
    %c0_61 = arith.constant 0 : index
    %c0_62 = arith.constant 0 : index
    %83 = vector.load %arg2[%c3, %c0_61, %c0_62] : memref<4x128x128xbf16, #tpu.memory_space<vmem>>, vector<1x128x128xbf16>
    %84 = vector.shape_cast %83 : vector<1x128x128xbf16> to vector<128x128xbf16>
    %cst_63 = arith.constant dense<0.000000e+00> : vector<8x128xf32>
    %85 = tpu.matmul %82, %84, %cst_63 {dimension_numbers = #tpu.dot_dimension_numbers<[1], [0], [0], [1], [0, 0, 1, 1], [], []>} : vector<8x128xbf16>, vector<128x128xbf16>, vector<8x128xf32> -> vector<8x128xf32>
    %c3_64 = arith.constant 3 : index
    %c0_65 = arith.constant 0 : index
    %c0_66 = arith.constant 0 : index
    %86 = vector.load %arg3[%c3_64, %c0_65, %c0_66] : memref<4x1x128xf32, #tpu.memory_space<vmem>>, vector<1x1x128xf32>
    %87 = vector.shape_cast %86 : vector<1x1x128xf32> to vector<1x128xf32>
    %88 = vector.broadcast %87 : vector<1x128xf32> to vector<8x128xf32>
    %89 = arith.addf %85, %88 : vector<8x128xf32>
    %90 = math.tanh %89 : vector<8x128xf32>
    %91 = arith.truncf %90 : vector<8x128xf32> to vector<8x128xbf16>
    %c3_67 = arith.constant 3 : index
    %c0_68 = arith.constant 0 : index
    %c0_69 = arith.constant 0 : index
    %92 = vector.load %arg4[%c3_67, %c0_68, %c0_69] : memref<4x128x128xbf16, #tpu.memory_space<vmem>>, vector<1x128x128xbf16>
    %93 = vector.shape_cast %92 : vector<1x128x128xbf16> to vector<128x128xbf16>
    %cst_70 = arith.constant dense<0.000000e+00> : vector<8x128xf32>
    %94 = tpu.matmul %91, %93, %cst_70 {dimension_numbers = #tpu.dot_dimension_numbers<[1], [0], [0], [1], [0, 0, 1, 1], [], []>} : vector<8x128xbf16>, vector<128x128xbf16>, vector<8x128xf32> -> vector<8x128xf32>
    %c3_71 = arith.constant 3 : index
    %c0_72 = arith.constant 0 : index
    %c0_73 = arith.constant 0 : index
    %95 = vector.load %arg5[%c3_71, %c0_72, %c0_73] : memref<4x1x128xf32, #tpu.memory_space<vmem>>, vector<1x1x128xf32>
    %96 = vector.shape_cast %95 : vector<1x1x128xf32> to vector<1x128xf32>
    %97 = vector.broadcast %96 : vector<1x128xf32> to vector<8x128xf32>
    %98 = arith.addf %94, %97 : vector<8x128xf32>
    %c3_74 = arith.constant 3 : index
    %c0_75 = arith.constant 0 : index
    %c0_76 = arith.constant 0 : index
    %99 = vector.load %arg6[%c3_74, %c0_75, %c0_76] : memref<4x128x128xbf16, #tpu.memory_space<vmem>>, vector<1x128x128xbf16>
    %100 = vector.shape_cast %99 : vector<1x128x128xbf16> to vector<128x128xbf16>
    %cst_77 = arith.constant dense<0.000000e+00> : vector<8x128xf32>
    %101 = tpu.matmul %91, %100, %cst_77 {dimension_numbers = #tpu.dot_dimension_numbers<[1], [0], [0], [1], [0, 0, 1, 1], [], []>} : vector<8x128xbf16>, vector<128x128xbf16>, vector<8x128xf32> -> vector<8x128xf32>
    %c3_78 = arith.constant 3 : index
    %c0_79 = arith.constant 0 : index
    %c0_80 = arith.constant 0 : index
    %102 = vector.load %arg7[%c3_78, %c0_79, %c0_80] : memref<4x1x128xf32, #tpu.memory_space<vmem>>, vector<1x1x128xf32>
    %103 = vector.shape_cast %102 : vector<1x1x128xf32> to vector<1x128xf32>
    %104 = vector.broadcast %103 : vector<1x128xf32> to vector<8x128xf32>
    %105 = arith.addf %101, %104 : vector<8x128xf32>
    %106 = math.exp %98 : vector<8x128xf32>
    %107 = arith.mulf %81, %106 : vector<8x128xf32>
    %108 = arith.addf %107, %105 : vector<8x128xf32>
    %c0_81 = arith.constant 0 : index
    %c0_82 = arith.constant 0 : index
    %109 = vector.load %arg8[%c0_81, %c0_82] : memref<8x128xf32, #tpu.memory_space<vmem>>, vector<8x128xf32>
    tpu.vector_store %arg8[%c0_81, %c0_82], %108 {strides = array<i32>} : memref<8x128xf32, #tpu.memory_space<vmem>>, vector<8x128xf32>,
    return
  }
  func.func @transform_0(%arg0: i32) -> (i32, i32) {
    %c0_i32 = arith.constant 0 : i32
    %c0_i32_0 = arith.constant 0 : i32
    return %arg0, %c0_i32 : i32, i32
  }
  func.func @transform_1(%arg0: i32) -> (i32, i32, i32) {
    %c0_i32 = arith.constant 0 : i32
    %c0_i32_0 = arith.constant 0 : i32
    %c0_i32_1 = arith.constant 0 : i32
    %c0_i32_2 = arith.constant 0 : i32
    return %c0_i32, %c0_i32_0, %c0_i32_1 : i32, i32, i32
  }
  func.func @transform_2(%arg0: i32) -> (i32, i32, i32) {
    %c0_i32 = arith.constant 0 : i32
    %c0_i32_0 = arith.constant 0 : i32
    %c0_i32_1 = arith.constant 0 : i32
    %c0_i32_2 = arith.constant 0 : i32
    return %c0_i32, %c0_i32_0, %c0_i32_1 : i32, i32, i32
  }
  func.func @transform_3(%arg0: i32) -> (i32, i32, i32) {
    %c0_i32 = arith.constant 0 : i32
    %c0_i32_0 = arith.constant 0 : i32
    %c0_i32_1 = arith.constant 0 : i32
    %c0_i32_2 = arith.constant 0 : i32
    return %c0_i32, %c0_i32_0, %c0_i32_1 : i32, i32, i32
  }
  func.func @transform_4(%arg0: i32) -> (i32, i32, i32) {
    %c0_i32 = arith.constant 0 : i32
    %c0_i32_0 = arith.constant 0 : i32
    %c0_i32_1 = arith.constant 0 : i32
    %c0_i32_2 = arith.constant 0 : i32
    return %c0_i32, %c0_i32_0, %c0_i32_1 : i32, i32, i32
  }
  func.func @transform_5(%arg0: i32) -> (i32, i32, i32) {
    %c0_i32 = arith.constant 0 : i32
    %c0_i32_0 = arith.constant 0 : i32
    %c0_i32_1 = arith.constant 0 : i32
    %c0_i32_2 = arith.constant 0 : i32
    return %c0_i32, %c0_i32_0, %c0_i32_1 : i32, i32, i32
  }
  func.func @transform_6(%arg0: i32) -> (i32, i32, i32) {
    %c0_i32 = arith.constant 0 : i32
    %c0_i32_0 = arith.constant 0 : i32
    %c0_i32_1 = arith.constant 0 : i32
    %c0_i32_2 = arith.constant 0 : i32
    return %c0_i32, %c0_i32_0, %c0_i32_1 : i32, i32, i32
  }
  func.func @transform_7(%arg0: i32) -> (i32, i32) {
    %c0_i32 = arith.constant 0 : i32
    %c0_i32_0 = arith.constant 0 : i32
    return %arg0, %c0_i32 : i32, i32
  }
}

</mosaic_0001>

<llo_original>
// kernel: context_normalizing_flow_forward.1
$region0: #{context_normalizing_flow_forward.1}
  #allocation0 [shape = 'u32[]', space=smem, size = 0x4, offset = 0x4, fixed_abs, tag = 'smem constant byte address 0x4 - core index']
  #allocation1 [shape = 'u32[72,128]{1,0:T(1,128)}', space=vmem, size = 0x9000, scoped, tag = 'internal scratch']
  %s0 = inlined_call_operand.vmem [shape: f32[8,128], index: 0, kind: input, shape index: {}, may-alias: {0,7}]
  %s1 = inlined_call_operand.vmem [shape: bf16[4,128,128], index: 1, kind: input, shape index: {}]
  %s2 = inlined_call_operand.vmem [shape: f32[4,1,128], index: 2, kind: input, shape index: {}]
  %s3 = inlined_call_operand.vmem [shape: bf16[4,128,128], index: 3, kind: input, shape index: {}]
  %s4 = inlined_call_operand.vmem [shape: f32[4,1,128], index: 4, kind: input, shape index: {}]
  %s5 = inlined_call_operand.vmem [shape: bf16[4,128,128], index: 5, kind: input, shape index: {}]
  %s6 = inlined_call_operand.vmem [shape: f32[4,1,128], index: 6, kind: input, shape index: {}]
  %s7 = inlined_call_operand.vmem [shape: f32[8,128], index: 7, kind: output, shape index: {}, may-alias: {0,7}]
  %s8 = sld [smem:[#allocation0]]
  $region38: #{context_normalizing_flow_forward.1} parent=0
    _
  %s10 = ssub.s32 1, %s8
  %s11 = scalar_select 0, %s10, %s8
  // Predicated region
  $region2: #{context_normalizing_flow_forward.1} parent=0 // pred_check
    _
  $region3: #{context_normalizing_flow_forward.1} parent=0 // pred_check_branch
    %13 = sbr.rel (0) target = $region5
  $region4: #{context_normalizing_flow_forward.1} parent=0 // pred_region
    _
  $region5: #{context_normalizing_flow_forward.1} parent=0 // pred_fallthru
    _
  // Predicated region
  $region6: #{context_normalizing_flow_forward.1} parent=0 // pred_check
    _
  $region7: #{context_normalizing_flow_forward.1} parent=0 // pred_check_branch
    %15 = sbr.rel (0) target = $region9
  $region8: #{context_normalizing_flow_forward.1} parent=0 // pred_region
    _
  $region9: #{context_normalizing_flow_forward.1} parent=0 // pred_fallthru
    _
  // Predicated region
  $region10: #{context_normalizing_flow_forward.1} parent=0 // pred_check
    _
  $region11: #{context_normalizing_flow_forward.1} parent=0 // pred_check_branch
    %17 = sbr.rel (0) target = $region13
  $region12: #{context_normalizing_flow_forward.1} parent=0 // pred_region
    _
  $region13: #{context_normalizing_flow_forward.1} parent=0 // pred_fallthru
    _
  // Predicated region
  $region14: #{context_normalizing_flow_forward.1} parent=0 // pred_check
    _
  $region15: #{context_normalizing_flow_forward.1} parent=0 // pred_check_branch
    %19 = sbr.rel (0) target = $region17
  $region16: #{context_normalizing_flow_forward.1} parent=0 // pred_region
    _
  $region17: #{context_normalizing_flow_forward.1} parent=0 // pred_fallthru
    _
  // Predicated region
  $region18: #{context_normalizing_flow_forward.1} parent=0 // pred_check
    _
  $region19: #{context_normalizing_flow_forward.1} parent=0 // pred_check_branch
    %21 = sbr.rel (0) target = $region21
  $region20: #{context_normalizing_flow_forward.1} parent=0 // pred_region
    _
  $region21: #{context_normalizing_flow_forward.1} parent=0 // pred_fallthru
    _
  // Predicated region
  $region22: #{context_normalizing_flow_forward.1} parent=0 // pred_check
    _
  $region23: #{context_normalizing_flow_forward.1} parent=0 // pred_check_branch
    %23 = sbr.rel (0) target = $region25
  $region24: #{context_normalizing_flow_forward.1} parent=0 // pred_region
    _
  $region25: #{context_normalizing_flow_forward.1} parent=0 // pred_fallthru
    _
  // Predicated region
  $region26: #{context_normalizing_flow_forward.1} parent=0 // pred_check
    _
  $region27: #{context_normalizing_flow_forward.1} parent=0 // pred_check_branch
    %25 = sbr.rel (0) target = $region29
  $region28: #{context_normalizing_flow_forward.1} parent=0 // pred_region
    _
  $region29: #{context_normalizing_flow_forward.1} parent=0 // pred_fallthru
    _
  %v26 = vld [vmem:[%s0] sm:$0xff]
  %v27 = vpack.c.bf16 %v26, %v26
  %v28 = vld [vmem:[%s1] sm:$0xf]
  %v29 = vld [vmem:[%s1 + $0x4] sm:$0xf]
  %v30 = vld [vmem:[%s1 + $0x8] sm:$0xf]
  %v31 = vld [vmem:[%s1 + $0xc] sm:$0xf]
  %v32 = vld [vmem:[%s1 + $0x10] sm:$0xf]
  %v33 = vld [vmem:[%s1 + $0x14] sm:$0xf]
  %v34 = vld [vmem:[%s1 + $0x18] sm:$0xf]
  %v35 = vld [vmem:[%s1 + $0x1c] sm:$0xf]
  %v36 = vld [vmem:[%s1 + $0x20] sm:$0xf]
  %v37 = vld [vmem:[%s1 + $0x24] sm:$0xf]
  %v38 = vld [vmem:[%s1 + $0x28] sm:$0xf]
  %v39 = vld [vmem:[%s1 + $0x2c] sm:$0xf]
  %v40 = vld [vmem:[%s1 + $0x30] sm:$0xf]
  %v41 = vld [vmem:[%s1 + $0x34] sm:$0xf]
  %v42 = vld [vmem:[%s1 + $0x38] sm:$0xf]
  %v43 = vld [vmem:[%s1 + $0x3c] sm:$0xf]
  %v44 = vld [vmem:[%s2] sm:$0x1]
  %v46 = vperm.slane %v44, 0
  %v64 = vunpack.c.l.b16 %v28
  %v65 = vunpack.c.l.b16 %v29
  %v66 = vunpack.c.l.b16 %v30
  %v67 = vunpack.c.l.b16 %v31
  %v68 = vunpack.c.l.b16 %v32
  %v69 = vunpack.c.l.b16 %v33
  %v70 = vunpack.c.l.b16 %v34
  %v71 = vunpack.c.l.b16 %v35
  %v72 = vunpack.c.l.b16 %v36
  %v73 = vunpack.c.l.b16 %v37
  %v74 = vunpack.c.l.b16 %v38
  %v75 = vunpack.c.l.b16 %v39
  %v76 = vunpack.c.l.b16 %v40
  %v77 = vunpack.c.l.b16 %v41
  %v78 = vunpack.c.l.b16 %v42
  %v79 = vunpack.c.l.b16 %v43
  %v80 = vpack.c.b16 %v65, %v64
  %v81 = vpack.c.b16 %v67, %v66
  %v82 = vpack.c.b16 %v69, %v68
  %v83 = vpack.c.b16 %v71, %v70
  %v84 = vpack.c.b16 %v73, %v72
  %v85 = vpack.c.b16 %v75, %v74
  %v86 = vpack.c.b16 %v77, %v76
  %v87 = vpack.c.b16 %v79, %v78
  %96 = vmatpush.bf16.msra.mxu0 %v87
  %97 = vmatpush.bf16.msra.mxu0 %v86
  %98 = vmatpush.bf16.msra.mxu0 %v85
  %99 = vmatpush.bf16.msra.mxu0 %v84
  %100 = vmatpush.bf16.msra.mxu0 %v83
  %101 = vmatpush.bf16.msra.mxu0 %v82
  %102 = vmatpush.bf16.msra.mxu0 %v81
  %103 = vmatpush.bf16.msra.mxu0 %v80
  %104 = vmatmul.bf16.gmra.mxu0 %v27
  %v105 = vpop.f32.mrf.mxu0
  %v106 = vadd.f32 %v46, %v105
  %v107 = vpop.f32.mrf.mxu0
  %108 = vdwg.mxu0
  %v109 = vtanh.pop %v106
  %v110 = vpack.c.bf16 %v109, %v109
  %v111 = vld [vmem:[%s3] sm:$0xf]
  %v112 = vld [vmem:[%s3 + $0x4] sm:$0xf]
  %v113 = vld [vmem:[%s3 + $0x8] sm:$0xf]
  %v114 = vld [vmem:[%s3 + $0xc] sm:$0xf]
  %v115 = vld [vmem:[%s3 + $0x10] sm:$0xf]
  %v116 = vld [vmem:[%s3 + $0x14] sm:$0xf]
  %v117 = vld [vmem:[%s3 + $0x18] sm:$0xf]
  %v118 = vld [vmem:[%s3 + $0x1c] sm:$0xf]
  %v119 = vld [vmem:[%s3 + $0x20] sm:$0xf]
  %v120 = vld [vmem:[%s3 + $0x24] sm:$0xf]
  %v121 = vld [vmem:[%s3 + $0x28] sm:$0xf]
  %v122 = vld [vmem:[%s3 + $0x2c] sm:$0xf]
  %v123 = vld [vmem:[%s3 + $0x30] sm:$0xf]
  %v124 = vld [vmem:[%s3 + $0x34] sm:$0xf]
  %v125 = vld [vmem:[%s3 + $0x38] sm:$0xf]
  %v126 = vld [vmem:[%s3 + $0x3c] sm:$0xf]
  %v127 = vld [vmem:[%s4] sm:$0x1]
  %v129 = vperm.slane %v127, 0
  %v147 = vunpack.c.l.b16 %v111
  %v148 = vunpack.c.l.b16 %v112
  %v149 = vunpack.c.l.b16 %v113
  %v150 = vunpack.c.l.b16 %v114
  %v151 = vunpack.c.l.b16 %v115
  %v152 = vunpack.c.l.b16 %v116
  %v153 = vunpack.c.l.b16 %v117
  %v154 = vunpack.c.l.b16 %v118
  %v155 = vunpack.c.l.b16 %v119
  %v156 = vunpack.c.l.b16 %v120
  %v157 = vunpack.c.l.b16 %v121
  %v158 = vunpack.c.l.b16 %v122
  %v159 = vunpack.c.l.b16 %v123
  %v160 = vunpack.c.l.b16 %v124
  %v161 = vunpack.c.l.b16 %v125
  %v162 = vunpack.c.l.b16 %v126
  %v163 = vpack.c.b16 %v148, %v147
  %v164 = vpack.c.b16 %v150, %v149
  %v165 = vpack.c.b16 %v152, %v151
  %v166 = vpack.c.b16 %v154, %v153
  %v167 = vpack.c.b16 %v156, %v155
  %v168 = vpack.c.b16 %v158, %v157
  %v169 = vpack.c.b16 %v160, %v159
  %v170 = vpack.c.b16 %v162, %v161
  %179 = vmatpush.bf16.msra.mxu0 %v170
  %180 = vmatpush.bf16.msra.mxu0 %v169
  %181 = vmatpush.bf16.msra.mxu0 %v168
  %182 = vmatpush.bf16.msra.mxu0 %v167
  %183 = vmatpush.bf16.msra.mxu0 %v166
  %184 = vmatpush.bf16.msra.mxu0 %v165
  %185 = vmatpush.bf16.msra.mxu0 %v164
  %186 = vmatpush.bf16.msra.mxu0 %v163
  %187 = vmatmul.bf16.gmra.mxu0 %v110
  %v188 = vpop.f32.mrf.mxu0
  %v189 = vadd.f32 %v129, %v188
  %v190 = vpop.f32.mrf.mxu0
  %191 = vdwg.mxu0
  %v192 = vld [vmem:[%s5] sm:$0xf]
  %v193 = vld [vmem:[%s5 + $0x4] sm:$0xf]
  %v194 = vld [vmem:[%s5 + $0x8] sm:$0xf]
  %v195 = vld [vmem:[%s5 + $0xc] sm:$0xf]
  %v196 = vld [vmem:[%s5 + $0x10] sm:$0xf]
  %v197 = vld [vmem:[%s5 + $0x14] sm:$0xf]
  %v198 = vld [vmem:[%s5 + $0x18] sm:$0xf]
  %v199 = vld [vmem:[%s5 + $0x1c] sm:$0xf]
  %v200 = vld [vmem:[%s5 + $0x20] sm:$0xf]
  %v201 = vld [vmem:[%s5 + $0x24] sm:$0xf]
  %v202 = vld [vmem:[%s5 + $0x28] sm:$0xf]
  %v203 = vld [vmem:[%s5 + $0x2c] sm:$0xf]
  %v204 = vld [vmem:[%s5 + $0x30] sm:$0xf]
  %v205 = vld [vmem:[%s5 + $0x34] sm:$0xf]
  %v206 = vld [vmem:[%s5 + $0x38] sm:$0xf]
  %v207 = vld [vmem:[%s5 + $0x3c] sm:$0xf]
  %v208 = vld [vmem:[%s6] sm:$0x1]
  %v210 = vperm.slane %v208, 0
  %v228 = vunpack.c.l.b16 %v192
  %v229 = vunpack.c.l.b16 %v193
  %v230 = vunpack.c.l.b16 %v194
  %v231 = vunpack.c.l.b16 %v195
  %v232 = vunpack.c.l.b16 %v196
  %v233 = vunpack.c.l.b16 %v197
  %v234 = vunpack.c.l.b16 %v198
  %v235 = vunpack.c.l.b16 %v199
  %v236 = vunpack.c.l.b16 %v200
  %v237 = vunpack.c.l.b16 %v201
  %v238 = vunpack.c.l.b16 %v202
  %v239 = vunpack.c.l.b16 %v203
  %v240 = vunpack.c.l.b16 %v204
  %v241 = vunpack.c.l.b16 %v205
  %v242 = vunpack.c.l.b16 %v206
  %v243 = vunpack.c.l.b16 %v207
  %v244 = vpack.c.b16 %v229, %v228
  %v245 = vpack.c.b16 %v231, %v230
  %v246 = vpack.c.b16 %v233, %v232
  %v247 = vpack.c.b16 %v235, %v234
  %v248 = vpack.c.b16 %v237, %v236
  %v249 = vpack.c.b16 %v239, %v238
  %v250 = vpack.c.b16 %v241, %v240
  %v251 = vpack.c.b16 %v243, %v242
  %260 = vmatpush.bf16.msra.mxu0 %v251
  %261 = vmatpush.bf16.msra.mxu0 %v250
  %262 = vmatpush.bf16.msra.mxu0 %v249
  %263 = vmatpush.bf16.msra.mxu0 %v248
  %264 = vmatpush.bf16.msra.mxu0 %v247
  %265 = vmatpush.bf16.msra.mxu0 %v246
  %266 = vmatpush.bf16.msra.mxu0 %v245
  %267 = vmatpush.bf16.msra.mxu0 %v244
  %268 = vmatmul.bf16.gmra.mxu0 %v110
  %v269 = vpop.f32.mrf.mxu0
  %v270 = vadd.f32 %v210, %v269
  %v271 = vpop.f32.mrf.mxu0
  %272 = vdwg.mxu0
  %v273 = vmul.f32 %v189, 1.442695
  %v274 = vpow.pop %v273
  %v275 = vmul.f32 %v26, %v274
  %v276 = vadd.f32 %v275, %v270
  %v277 = vpack.c.bf16 %v276, %v276
  %s278 = scalar_lea.vmem %s1, 64
  %v279 = vld [vmem:[%s278] sm:$0xf]
  %v280 = vld [vmem:[%s278 + $0x4] sm:$0xf]
  %v281 = vld [vmem:[%s278 + $0x8] sm:$0xf]
  %v282 = vld [vmem:[%s278 + $0xc] sm:$0xf]
  %v283 = vld [vmem:[%s278 + $0x10] sm:$0xf]
  %v284 = vld [vmem:[%s278 + $0x14] sm:$0xf]
  %v285 = vld [vmem:[%s278 + $0x18] sm:$0xf]
  %v286 = vld [vmem:[%s278 + $0x1c] sm:$0xf]
  %v287 = vld [vmem:[%s278 + $0x20] sm:$0xf]
  %v288 = vld [vmem:[%s278 + $0x24] sm:$0xf]
  %v289 = vld [vmem:[%s278 + $0x28] sm:$0xf]
  %v290 = vld [vmem:[%s278 + $0x2c] sm:$0xf]
  %v291 = vld [vmem:[%s278 + $0x30] sm:$0xf]
  %v292 = vld [vmem:[%s278 + $0x34] sm:$0xf]
  %v293 = vld [vmem:[%s278 + $0x38] sm:$0xf]
  %v294 = vld [vmem:[%s278 + $0x3c] sm:$0xf]
  %s295 = scalar_lea.vmem %s2, 1
  %v296 = vld [vmem:[%s295] sm:$0x1]
  %v298 = vperm.slane %v296, 0
  %v316 = vunpack.c.l.b16 %v279
  %v317 = vunpack.c.l.b16 %v280
  %v318 = vunpack.c.l.b16 %v281
  %v319 = vunpack.c.l.b16 %v282
  %v320 = vunpack.c.l.b16 %v283
  %v321 = vunpack.c.l.b16 %v284
  %v322 = vunpack.c.l.b16 %v285
  %v323 = vunpack.c.l.b16 %v286
  %v324 = vunpack.c.l.b16 %v287
  %v325 = vunpack.c.l.b16 %v288
  %v326 = vunpack.c.l.b16 %v289
  %v327 = vunpack.c.l.b16 %v290
  %v328 = vunpack.c.l.b16 %v291
  %v329 = vunpack.c.l.b16 %v292
  %v330 = vunpack.c.l.b16 %v293
  %v331 = vunpack.c.l.b16 %v294
  %v332 = vpack.c.b16 %v317, %v316
  %v333 = vpack.c.b16 %v319, %v318
  %v334 = vpack.c.b16 %v321, %v320
  %v335 = vpack.c.b16 %v323, %v322
  %v336 = vpack.c.b16 %v325, %v324
  %v337 = vpack.c.b16 %v327, %v326
  %v338 = vpack.c.b16 %v329, %v328
  %v339 = vpack.c.b16 %v331, %v330
  %348 = vmatpush.bf16.msra.mxu0 %v339
  %349 = vmatpush.bf16.msra.mxu0 %v338
  %350 = vmatpush.bf16.msra.mxu0 %v337
  %351 = vmatpush.bf16.msra.mxu0 %v336
  %352 = vmatpush.bf16.msra.mxu0 %v335
  %353 = vmatpush.bf16.msra.mxu0 %v334
  %354 = vmatpush.bf16.msra.mxu0 %v333
  %355 = vmatpush.bf16.msra.mxu0 %v332
  %356 = vmatmul.bf16.gmra.mxu0 %v277
  %v357 = vpop.f32.mrf.mxu0
  %v358 = vadd.f32 %v298, %v357
  %v359 = vpop.f32.mrf.mxu0
  %360 = vdwg.mxu0
  %v361 = vtanh.pop %v358
  %v362 = vpack.c.bf16 %v361, %v361
  %s363 = scalar_lea.vmem %s3, 64
  %v364 = vld [vmem:[%s363] sm:$0xf]
  %v365 = vld [vmem:[%s363 + $0x4] sm:$0xf]
  %v366 = vld [vmem:[%s363 + $0x8] sm:$0xf]
  %v367 = vld [vmem:[%s363 + $0xc] sm:$0xf]
  %v368 = vld [vmem:[%s363 + $0x10] sm:$0xf]
  %v369 = vld [vmem:[%s363 + $0x14] sm:$0xf]
  %v370 = vld [vmem:[%s363 + $0x18] sm:$0xf]
  %v371 = vld [vmem:[%s363 + $0x1c] sm:$0xf]
  %v372 = vld [vmem:[%s363 + $0x20] sm:$0xf]
  %v373 = vld [vmem:[%s363 + $0x24] sm:$0xf]
  %v374 = vld [vmem:[%s363 + $0x28] sm:$0xf]
  %v375 = vld [vmem:[%s363 + $0x2c] sm:$0xf]
  %v376 = vld [vmem:[%s363 + $0x30] sm:$0xf]
  %v377 = vld [vmem:[%s363 + $0x34] sm:$0xf]
  %v378 = vld [vmem:[%s363 + $0x38] sm:$0xf]
  %v379 = vld [vmem:[%s363 + $0x3c] sm:$0xf]
  %s380 = scalar_lea.vmem %s4, 1
  %v381 = vld [vmem:[%s380] sm:$0x1]
  %v383 = vperm.slane %v381, 0
  %v401 = vunpack.c.l.b16 %v364
  %v402 = vunpack.c.l.b16 %v365
  %v403 = vunpack.c.l.b16 %v366
  %v404 = vunpack.c.l.b16 %v367
  %v405 = vunpack.c.l.b16 %v368
  %v406 = vunpack.c.l.b16 %v369
  %v407 = vunpack.c.l.b16 %v370
  %v408 = vunpack.c.l.b16 %v371
  %v409 = vunpack.c.l.b16 %v372
  %v410 = vunpack.c.l.b16 %v373
  %v411 = vunpack.c.l.b16 %v374
  %v412 = vunpack.c.l.b16 %v375
  %v413 = vunpack.c.l.b16 %v376
  %v414 = vunpack.c.l.b16 %v377
  %v415 = vunpack.c.l.b16 %v378
  %v416 = vunpack.c.l.b16 %v379
  %v417 = vpack.c.b16 %v402, %v401
  %v418 = vpack.c.b16 %v404, %v403
  %v419 = vpack.c.b16 %v406, %v405
  %v420 = vpack.c.b16 %v408, %v407
  %v421 = vpack.c.b16 %v410, %v409
  %v422 = vpack.c.b16 %v412, %v411
  %v423 = vpack.c.b16 %v414, %v413
  %v424 = vpack.c.b16 %v416, %v415
  %433 = vmatpush.bf16.msra.mxu0 %v424
  %434 = vmatpush.bf16.msra.mxu0 %v423
  %435 = vmatpush.bf16.msra.mxu0 %v422
  %436 = vmatpush.bf16.msra.mxu0 %v421
  %437 = vmatpush.bf16.msra.mxu0 %v420
  %438 = vmatpush.bf16.msra.mxu0 %v419
  %439 = vmatpush.bf16.msra.mxu0 %v418
  %440 = vmatpush.bf16.msra.mxu0 %v417
  %441 = vmatmul.bf16.gmra.mxu0 %v362
  %v442 = vpop.f32.mrf.mxu0
  %v443 = vadd.f32 %v383, %v442
  %v444 = vpop.f32.mrf.mxu0
  %445 = vdwg.mxu0
  %s446 = scalar_lea.vmem %s5, 64
  %v447 = vld [vmem:[%s446] sm:$0xf]
  %v448 = vld [vmem:[%s446 + $0x4] sm:$0xf]
  %v449 = vld [vmem:[%s446 + $0x8] sm:$0xf]
  %v450 = vld [vmem:[%s446 + $0xc] sm:$0xf]
  %v451 = vld [vmem:[%s446 + $0x10] sm:$0xf]
  %v452 = vld [vmem:[%s446 + $0x14] sm:$0xf]
  %v453 = vld [vmem:[%s446 + $0x18] sm:$0xf]
  %v454 = vld [vmem:[%s446 + $0x1c] sm:$0xf]
  %v455 = vld [vmem:[%s446 + $0x20] sm:$0xf]
  %v456 = vld [vmem:[%s446 + $0x24] sm:$0xf]
  %v457 = vld [vmem:[%s446 + $0x28] sm:$0xf]
  %v458 = vld [vmem:[%s446 + $0x2c] sm:$0xf]
  %v459 = vld [vmem:[%s446 + $0x30] sm:$0xf]
  %v460 = vld [vmem:[%s446 + $0x34] sm:$0xf]
  %v461 = vld [vmem:[%s446 + $0x38] sm:$0xf]
  %v462 = vld [vmem:[%s446 + $0x3c] sm:$0xf]
  %s463 = scalar_lea.vmem %s6, 1
  %v464 = vld [vmem:[%s463] sm:$0x1]
  %v466 = vperm.slane %v464, 0
  %v484 = vunpack.c.l.b16 %v447
  %v485 = vunpack.c.l.b16 %v448
  %v486 = vunpack.c.l.b16 %v449
  %v487 = vunpack.c.l.b16 %v450
  %v488 = vunpack.c.l.b16 %v451
  %v489 = vunpack.c.l.b16 %v452
  %v490 = vunpack.c.l.b16 %v453
  %v491 = vunpack.c.l.b16 %v454
  %v492 = vunpack.c.l.b16 %v455
  %v493 = vunpack.c.l.b16 %v456
  %v494 = vunpack.c.l.b16 %v457
  %v495 = vunpack.c.l.b16 %v458
  %v496 = vunpack.c.l.b16 %v459
  %v497 = vunpack.c.l.b16 %v460
  %v498 = vunpack.c.l.b16 %v461
  %v499 = vunpack.c.l.b16 %v462
  %v500 = vpack.c.b16 %v485, %v484
  %v501 = vpack.c.b16 %v487, %v486
  %v502 = vpack.c.b16 %v489, %v488
  %v503 = vpack.c.b16 %v491, %v490
  %v504 = vpack.c.b16 %v493, %v492
  %v505 = vpack.c.b16 %v495, %v494
  %v506 = vpack.c.b16 %v497, %v496
  %v507 = vpack.c.b16 %v499, %v498
  %516 = vmatpush.bf16.msra.mxu0 %v507
  %517 = vmatpush.bf16.msra.mxu0 %v506
  %518 = vmatpush.bf16.msra.mxu0 %v505
  %519 = vmatpush.bf16.msra.mxu0 %v504
  %520 = vmatpush.bf16.msra.mxu0 %v503
  %521 = vmatpush.bf16.msra.mxu0 %v502
  %522 = vmatpush.bf16.msra.mxu0 %v501
  %523 = vmatpush.bf16.msra.mxu0 %v500
  %524 = vmatmul.bf16.gmra.mxu0 %v362
  %v525 = vpop.f32.mrf.mxu0
  %v526 = vadd.f32 %v466, %v525
  %v527 = vpop.f32.mrf.mxu0
  %528 = vdwg.mxu0
  %v529 = vmul.f32 %v443, 1.442695
  %v530 = vpow.pop %v529
  %v531 = vmul.f32 %v276, %v530
  %v532 = vadd.f32 %v531, %v526
  %v533 = vpack.c.bf16 %v532, %v532
  %s534 = scalar_lea.vmem %s1, 128
  %v535 = vld [vmem:[%s534] sm:$0xf]
  %v536 = vld [vmem:[%s534 + $0x4] sm:$0xf]
  %v537 = vld [vmem:[%s534 + $0x8] sm:$0xf]
  %v538 = vld [vmem:[%s534 + $0xc] sm:$0xf]
  %v539 = vld [vmem:[%s534 + $0x10] sm:$0xf]
  %v540 = vld [vmem:[%s534 + $0x14] sm:$0xf]
  %v541 = vld [vmem:[%s534 + $0x18] sm:$0xf]
  %v542 = vld [vmem:[%s534 + $0x1c] sm:$0xf]
  %v543 = vld [vmem:[%s534 + $0x20] sm:$0xf]
  %v544 = vld [vmem:[%s534 + $0x24] sm:$0xf]
  %v545 = vld [vmem:[%s534 + $0x28] sm:$0xf]
  %v546 = vld [vmem:[%s534 + $0x2c] sm:$0xf]
  %v547 = vld [vmem:[%s534 + $0x30] sm:$0xf]
  %v548 = vld [vmem:[%s534 + $0x34] sm:$0xf]
  %v549 = vld [vmem:[%s534 + $0x38] sm:$0xf]
  %v550 = vld [vmem:[%s534 + $0x3c] sm:$0xf]
  %s551 = scalar_lea.vmem %s2, 2
  %v552 = vld [vmem:[%s551] sm:$0x1]
  %v554 = vperm.slane %v552, 0
  %v572 = vunpack.c.l.b16 %v535
  %v573 = vunpack.c.l.b16 %v536
  %v574 = vunpack.c.l.b16 %v537
  %v575 = vunpack.c.l.b16 %v538
  %v576 = vunpack.c.l.b16 %v539
  %v577 = vunpack.c.l.b16 %v540
  %v578 = vunpack.c.l.b16 %v541
  %v579 = vunpack.c.l.b16 %v542
  %v580 = vunpack.c.l.b16 %v543
  %v581 = vunpack.c.l.b16 %v544
  %v582 = vunpack.c.l.b16 %v545
  %v583 = vunpack.c.l.b16 %v546
  %v584 = vunpack.c.l.b16 %v547
  %v585 = vunpack.c.l.b16 %v548
  %v586 = vunpack.c.l.b16 %v549
  %v587 = vunpack.c.l.b16 %v550
  %v588 = vpack.c.b16 %v573, %v572
  %v589 = vpack.c.b16 %v575, %v574
  %v590 = vpack.c.b16 %v577, %v576
  %v591 = vpack.c.b16 %v579, %v578
  %v592 = vpack.c.b16 %v581, %v580
  %v593 = vpack.c.b16 %v583, %v582
  %v594 = vpack.c.b16 %v585, %v584
  %v595 = vpack.c.b16 %v587, %v586
  %604 = vmatpush.bf16.msra.mxu0 %v595
  %605 = vmatpush.bf16.msra.mxu0 %v594
  %606 = vmatpush.bf16.msra.mxu0 %v593
  %607 = vmatpush.bf16.msra.mxu0 %v592
  %608 = vmatpush.bf16.msra.mxu0 %v591
  %609 = vmatpush.bf16.msra.mxu0 %v590
  %610 = vmatpush.bf16.msra.mxu0 %v589
  %611 = vmatpush.bf16.msra.mxu0 %v588
  %612 = vmatmul.bf16.gmra.mxu0 %v533
  %v613 = vpop.f32.mrf.mxu0
  %v614 = vadd.f32 %v554, %v613
  %v615 = vpop.f32.mrf.mxu0
  %616 = vdwg.mxu0
  %v617 = vtanh.pop %v614
  %v618 = vpack.c.bf16 %v617, %v617
  %s619 = scalar_lea.vmem %s3, 128
  %v620 = vld [vmem:[%s619] sm:$0xf]
  %v621 = vld [vmem:[%s619 + $0x4] sm:$0xf]
  %v622 = vld [vmem:[%s619 + $0x8] sm:$0xf]
  %v623 = vld [vmem:[%s619 + $0xc] sm:$0xf]
  %v624 = vld [vmem:[%s619 + $0x10] sm:$0xf]
  %v625 = vld [vmem:[%s619 + $0x14] sm:$0xf]
  %v626 = vld [vmem:[%s619 + $0x18] sm:$0xf]
  %v627 = vld [vmem:[%s619 + $0x1c] sm:$0xf]
  %v628 = vld [vmem:[%s619 + $0x20] sm:$0xf]
  %v629 = vld [vmem:[%s619 + $0x24] sm:$0xf]
  %v630 = vld [vmem:[%s619 + $0x28] sm:$0xf]
  %v631 = vld [vmem:[%s619 + $0x2c] sm:$0xf]
  %v632 = vld [vmem:[%s619 + $0x30] sm:$0xf]
  %v633 = vld [vmem:[%s619 + $0x34] sm:$0xf]
  %v634 = vld [vmem:[%s619 + $0x38] sm:$0xf]
  %v635 = vld [vmem:[%s619 + $0x3c] sm:$0xf]
  %s636 = scalar_lea.vmem %s4, 2
  %v637 = vld [vmem:[%s636] sm:$0x1]
  %v639 = vperm.slane %v637, 0
  %v657 = vunpack.c.l.b16 %v620
  %v658 = vunpack.c.l.b16 %v621
  %v659 = vunpack.c.l.b16 %v622
  %v660 = vunpack.c.l.b16 %v623
  %v661 = vunpack.c.l.b16 %v624
  %v662 = vunpack.c.l.b16 %v625
  %v663 = vunpack.c.l.b16 %v626
  %v664 = vunpack.c.l.b16 %v627
  %v665 = vunpack.c.l.b16 %v628
  %v666 = vunpack.c.l.b16 %v629
  %v667 = vunpack.c.l.b16 %v630
  %v668 = vunpack.c.l.b16 %v631
  %v669 = vunpack.c.l.b16 %v632
  %v670 = vunpack.c.l.b16 %v633
  %v671 = vunpack.c.l.b16 %v634
  %v672 = vunpack.c.l.b16 %v635
  %v673 = vpack.c.b16 %v658, %v657
  %v674 = vpack.c.b16 %v660, %v659
  %v675 = vpack.c.b16 %v662, %v661
  %v676 = vpack.c.b16 %v664, %v663
  %v677 = vpack.c.b16 %v666, %v665
  %v678 = vpack.c.b16 %v668, %v667
  %v679 = vpack.c.b16 %v670, %v669
  %v680 = vpack.c.b16 %v672, %v671
  %689 = vmatpush.bf16.msra.mxu0 %v680
  %690 = vmatpush.bf16.msra.mxu0 %v679
  %691 = vmatpush.bf16.msra.mxu0 %v678
  %692 = vmatpush.bf16.msra.mxu0 %v677
  %693 = vmatpush.bf16.msra.mxu0 %v676
  %694 = vmatpush.bf16.msra.mxu0 %v675
  %695 = vmatpush.bf16.msra.mxu0 %v674
  %696 = vmatpush.bf16.msra.mxu0 %v673
  %697 = vmatmul.bf16.gmra.mxu0 %v618
  %v698 = vpop.f32.mrf.mxu0
  %v699 = vadd.f32 %v639, %v698
  %v700 = vpop.f32.mrf.mxu0
  %701 = vdwg.mxu0
  %s702 = scalar_lea.vmem %s5, 128
  %v703 = vld [vmem:[%s702] sm:$0xf]
  %v704 = vld [vmem:[%s702 + $0x4] sm:$0xf]
  %v705 = vld [vmem:[%s702 + $0x8] sm:$0xf]
  %v706 = vld [vmem:[%s702 + $0xc] sm:$0xf]
  %v707 = vld [vmem:[%s702 + $0x10] sm:$0xf]
  %v708 = vld [vmem:[%s702 + $0x14] sm:$0xf]
  %v709 = vld [vmem:[%s702 + $0x18] sm:$0xf]
  %v710 = vld [vmem:[%s702 + $0x1c] sm:$0xf]
  %v711 = vld [vmem:[%s702 + $0x20] sm:$0xf]
  %v712 = vld [vmem:[%s702 + $0x24] sm:$0xf]
  %v713 = vld [vmem:[%s702 + $0x28] sm:$0xf]
  %v714 = vld [vmem:[%s702 + $0x2c] sm:$0xf]
  %v715 = vld [vmem:[%s702 + $0x30] sm:$0xf]
  %v716 = vld [vmem:[%s702 + $0x34] sm:$0xf]
  %v717 = vld [vmem:[%s702 + $0x38] sm:$0xf]
  %v718 = vld [vmem:[%s702 + $0x3c] sm:$0xf]
  %s719 = scalar_lea.vmem %s6, 2
  %v720 = vld [vmem:[%s719] sm:$0x1]
  %v722 = vperm.slane %v720, 0
  %v740 = vunpack.c.l.b16 %v703
  %v741 = vunpack.c.l.b16 %v704
  %v742 = vunpack.c.l.b16 %v705
  %v743 = vunpack.c.l.b16 %v706
  %v744 = vunpack.c.l.b16 %v707
  %v745 = vunpack.c.l.b16 %v708
  %v746 = vunpack.c.l.b16 %v709
  %v747 = vunpack.c.l.b16 %v710
  %v748 = vunpack.c.l.b16 %v711
  %v749 = vunpack.c.l.b16 %v712
  %v750 = vunpack.c.l.b16 %v713
  %v751 = vunpack.c.l.b16 %v714
  %v752 = vunpack.c.l.b16 %v715
  %v753 = vunpack.c.l.b16 %v716
  %v754 = vunpack.c.l.b16 %v717
  %v755 = vunpack.c.l.b16 %v718
  %v756 = vpack.c.b16 %v741, %v740
  %v757 = vpack.c.b16 %v743, %v742
  %v758 = vpack.c.b16 %v745, %v744
  %v759 = vpack.c.b16 %v747, %v746
  %v760 = vpack.c.b16 %v749, %v748
  %v761 = vpack.c.b16 %v751, %v750
  %v762 = vpack.c.b16 %v753, %v752
  %v763 = vpack.c.b16 %v755, %v754
  %772 = vmatpush.bf16.msra.mxu0 %v763
  %773 = vmatpush.bf16.msra.mxu0 %v762
  %774 = vmatpush.bf16.msra.mxu0 %v761
  %775 = vmatpush.bf16.msra.mxu0 %v760
  %776 = vmatpush.bf16.msra.mxu0 %v759
  %777 = vmatpush.bf16.msra.mxu0 %v758
  %778 = vmatpush.bf16.msra.mxu0 %v757
  %779 = vmatpush.bf16.msra.mxu0 %v756
  %780 = vmatmul.bf16.gmra.mxu0 %v618
  %v781 = vpop.f32.mrf.mxu0
  %v782 = vadd.f32 %v722, %v781
  %v783 = vpop.f32.mrf.mxu0
  %784 = vdwg.mxu0
  %v785 = vmul.f32 %v699, 1.442695
  %v786 = vpow.pop %v785
  %v787 = vmul.f32 %v532, %v786
  %v788 = vadd.f32 %v787, %v782
  %v789 = vpack.c.bf16 %v788, %v788
  %s790 = scalar_lea.vmem %s1, 192
  %v791 = vld [vmem:[%s790] sm:$0xf]
  %v792 = vld [vmem:[%s790 + $0x4] sm:$0xf]
  %v793 = vld [vmem:[%s790 + $0x8] sm:$0xf]
  %v794 = vld [vmem:[%s790 + $0xc] sm:$0xf]
  %v795 = vld [vmem:[%s790 + $0x10] sm:$0xf]
  %v796 = vld [vmem:[%s790 + $0x14] sm:$0xf]
  %v797 = vld [vmem:[%s790 + $0x18] sm:$0xf]
  %v798 = vld [vmem:[%s790 + $0x1c] sm:$0xf]
  %v799 = vld [vmem:[%s790 + $0x20] sm:$0xf]
  %v800 = vld [vmem:[%s790 + $0x24] sm:$0xf]
  %v801 = vld [vmem:[%s790 + $0x28] sm:$0xf]
  %v802 = vld [vmem:[%s790 + $0x2c] sm:$0xf]
  %v803 = vld [vmem:[%s790 + $0x30] sm:$0xf]
  %v804 = vld [vmem:[%s790 + $0x34] sm:$0xf]
  %v805 = vld [vmem:[%s790 + $0x38] sm:$0xf]
  %v806 = vld [vmem:[%s790 + $0x3c] sm:$0xf]
  %s807 = scalar_lea.vmem %s2, 3
  %v808 = vld [vmem:[%s807] sm:$0x1]
  %v810 = vperm.slane %v808, 0
  %v828 = vunpack.c.l.b16 %v791
  %v829 = vunpack.c.l.b16 %v792
  %v830 = vunpack.c.l.b16 %v793
  %v831 = vunpack.c.l.b16 %v794
  %v832 = vunpack.c.l.b16 %v795
  %v833 = vunpack.c.l.b16 %v796
  %v834 = vunpack.c.l.b16 %v797
  %v835 = vunpack.c.l.b16 %v798
  %v836 = vunpack.c.l.b16 %v799
  %v837 = vunpack.c.l.b16 %v800
  %v838 = vunpack.c.l.b16 %v801
  %v839 = vunpack.c.l.b16 %v802
  %v840 = vunpack.c.l.b16 %v803
  %v841 = vunpack.c.l.b16 %v804
  %v842 = vunpack.c.l.b16 %v805
  %v843 = vunpack.c.l.b16 %v806
  %v844 = vpack.c.b16 %v829, %v828
  %v845 = vpack.c.b16 %v831, %v830
  %v846 = vpack.c.b16 %v833, %v832
  %v847 = vpack.c.b16 %v835, %v834
  %v848 = vpack.c.b16 %v837, %v836
  %v849 = vpack.c.b16 %v839, %v838
  %v850 = vpack.c.b16 %v841, %v840
  %v851 = vpack.c.b16 %v843, %v842
  %860 = vmatpush.bf16.msra.mxu0 %v851
  %861 = vmatpush.bf16.msra.mxu0 %v850
  %862 = vmatpush.bf16.msra.mxu0 %v849
  %863 = vmatpush.bf16.msra.mxu0 %v848
  %864 = vmatpush.bf16.msra.mxu0 %v847
  %865 = vmatpush.bf16.msra.mxu0 %v846
  %866 = vmatpush.bf16.msra.mxu0 %v845
  %867 = vmatpush.bf16.msra.mxu0 %v844
  %868 = vmatmul.bf16.gmra.mxu0 %v789
  %v869 = vpop.f32.mrf.mxu0
  %v870 = vadd.f32 %v810, %v869
  %v871 = vpop.f32.mrf.mxu0
  %872 = vdwg.mxu0
  %v873 = vtanh.pop %v870
  %v874 = vpack.c.bf16 %v873, %v873
  %s875 = scalar_lea.vmem %s3, 192
  %v876 = vld [vmem:[%s875] sm:$0xf]
  %v877 = vld [vmem:[%s875 + $0x4] sm:$0xf]
  %v878 = vld [vmem:[%s875 + $0x8] sm:$0xf]
  %v879 = vld [vmem:[%s875 + $0xc] sm:$0xf]
  %v880 = vld [vmem:[%s875 + $0x10] sm:$0xf]
  %v881 = vld [vmem:[%s875 + $0x14] sm:$0xf]
  %v882 = vld [vmem:[%s875 + $0x18] sm:$0xf]
  %v883 = vld [vmem:[%s875 + $0x1c] sm:$0xf]
  %v884 = vld [vmem:[%s875 + $0x20] sm:$0xf]
  %v885 = vld [vmem:[%s875 + $0x24] sm:$0xf]
  %v886 = vld [vmem:[%s875 + $0x28] sm:$0xf]
  %v887 = vld [vmem:[%s875 + $0x2c] sm:$0xf]
  %v888 = vld [vmem:[%s875 + $0x30] sm:$0xf]
  %v889 = vld [vmem:[%s875 + $0x34] sm:$0xf]
  %v890 = vld [vmem:[%s875 + $0x38] sm:$0xf]
  %v891 = vld [vmem:[%s875 + $0x3c] sm:$0xf]
  %s892 = scalar_lea.vmem %s4, 3
  %v893 = vld [vmem:[%s892] sm:$0x1]
  %v895 = vperm.slane %v893, 0
  %v913 = vunpack.c.l.b16 %v876
  %v914 = vunpack.c.l.b16 %v877
  %v915 = vunpack.c.l.b16 %v878
  %v916 = vunpack.c.l.b16 %v879
  %v917 = vunpack.c.l.b16 %v880
  %v918 = vunpack.c.l.b16 %v881
  %v919 = vunpack.c.l.b16 %v882
  %v920 = vunpack.c.l.b16 %v883
  %v921 = vunpack.c.l.b16 %v884
  %v922 = vunpack.c.l.b16 %v885
  %v923 = vunpack.c.l.b16 %v886
  %v924 = vunpack.c.l.b16 %v887
  %v925 = vunpack.c.l.b16 %v888
  %v926 = vunpack.c.l.b16 %v889
  %v927 = vunpack.c.l.b16 %v890
  %v928 = vunpack.c.l.b16 %v891
  %v929 = vpack.c.b16 %v914, %v913
  %v930 = vpack.c.b16 %v916, %v915
  %v931 = vpack.c.b16 %v918, %v917
  %v932 = vpack.c.b16 %v920, %v919
  %v933 = vpack.c.b16 %v922, %v921
  %v934 = vpack.c.b16 %v924, %v923
  %v935 = vpack.c.b16 %v926, %v925
  %v936 = vpack.c.b16 %v928, %v927
  %945 = vmatpush.bf16.msra.mxu0 %v936
  %946 = vmatpush.bf16.msra.mxu0 %v935
  %947 = vmatpush.bf16.msra.mxu0 %v934
  %948 = vmatpush.bf16.msra.mxu0 %v933
  %949 = vmatpush.bf16.msra.mxu0 %v932
  %950 = vmatpush.bf16.msra.mxu0 %v931
  %951 = vmatpush.bf16.msra.mxu0 %v930
  %952 = vmatpush.bf16.msra.mxu0 %v929
  %953 = vmatmul.bf16.gmra.mxu0 %v874
  %v954 = vpop.f32.mrf.mxu0
  %v955 = vadd.f32 %v895, %v954
  %v956 = vpop.f32.mrf.mxu0
  %957 = vdwg.mxu0
  %s958 = scalar_lea.vmem %s5, 192
  %v959 = vld [vmem:[%s958] sm:$0xf]
  %v960 = vld [vmem:[%s958 + $0x4] sm:$0xf]
  %v961 = vld [vmem:[%s958 + $0x8] sm:$0xf]
  %v962 = vld [vmem:[%s958 + $0xc] sm:$0xf]
  %v963 = vld [vmem:[%s958 + $0x10] sm:$0xf]
  %v964 = vld [vmem:[%s958 + $0x14] sm:$0xf]
  %v965 = vld [vmem:[%s958 + $0x18] sm:$0xf]
  %v966 = vld [vmem:[%s958 + $0x1c] sm:$0xf]
  %v967 = vld [vmem:[%s958 + $0x20] sm:$0xf]
  %v968 = vld [vmem:[%s958 + $0x24] sm:$0xf]
  %v969 = vld [vmem:[%s958 + $0x28] sm:$0xf]
  %v970 = vld [vmem:[%s958 + $0x2c] sm:$0xf]
  %v971 = vld [vmem:[%s958 + $0x30] sm:$0xf]
  %v972 = vld [vmem:[%s958 + $0x34] sm:$0xf]
  %v973 = vld [vmem:[%s958 + $0x38] sm:$0xf]
  %v974 = vld [vmem:[%s958 + $0x3c] sm:$0xf]
  %s975 = scalar_lea.vmem %s6, 3
  %v976 = vld [vmem:[%s975] sm:$0x1]
  %v978 = vperm.slane %v976, 0
  %v996 = vunpack.c.l.b16 %v959
  %v997 = vunpack.c.l.b16 %v960
  %v998 = vunpack.c.l.b16 %v961
  %v999 = vunpack.c.l.b16 %v962
  %v1000 = vunpack.c.l.b16 %v963
  %v1001 = vunpack.c.l.b16 %v964
  %v1002 = vunpack.c.l.b16 %v965
  %v1003 = vunpack.c.l.b16 %v966
  %v1004 = vunpack.c.l.b16 %v967
  %v1005 = vunpack.c.l.b16 %v968
  %v1006 = vunpack.c.l.b16 %v969
  %v1007 = vunpack.c.l.b16 %v970
  %v1008 = vunpack.c.l.b16 %v971
  %v1009 = vunpack.c.l.b16 %v972
  %v1010 = vunpack.c.l.b16 %v973
  %v1011 = vunpack.c.l.b16 %v974
  %v1012 = vpack.c.b16 %v997, %v996
  %v1013 = vpack.c.b16 %v999, %v998
  %v1014 = vpack.c.b16 %v1001, %v1000
  %v1015 = vpack.c.b16 %v1003, %v1002
  %v1016 = vpack.c.b16 %v1005, %v1004
  %v1017 = vpack.c.b16 %v1007, %v1006
  %v1018 = vpack.c.b16 %v1009, %v1008
  %v1019 = vpack.c.b16 %v1011, %v1010
  %1028 = vmatpush.bf16.msra.mxu0 %v1019
  %1029 = vmatpush.bf16.msra.mxu0 %v1018
  %1030 = vmatpush.bf16.msra.mxu0 %v1017
  %1031 = vmatpush.bf16.msra.mxu0 %v1016
  %1032 = vmatpush.bf16.msra.mxu0 %v1015
  %1033 = vmatpush.bf16.msra.mxu0 %v1014
  %1034 = vmatpush.bf16.msra.mxu0 %v1013
  %1035 = vmatpush.bf16.msra.mxu0 %v1012
  %1036 = vmatmul.bf16.gmra.mxu0 %v874
  %v1037 = vpop.f32.mrf.mxu0
  %v1038 = vadd.f32 %v978, %v1037
  %v1039 = vpop.f32.mrf.mxu0
  %1040 = vdwg.mxu0
  %v1041 = vmul.f32 %v955, 1.442695
  %v1042 = vpow.pop %v1041
  %v1043 = vmul.f32 %v788, %v1042
  %v1044 = vadd.f32 %v1043, %v1038
  %1045 = vst [vmem:[%s7] sm:$0xff] %v1044
  // Predicated region
  $region30: #{context_normalizing_flow_forward.1} parent=0 // pred_check
    _
  $region31: #{context_normalizing_flow_forward.1} parent=0 // pred_check_branch
    %1047 = sbr.rel (0) target = $region33
  $region32: #{context_normalizing_flow_forward.1} parent=0 // pred_region
    _
  $region33: #{context_normalizing_flow_forward.1} parent=0 // pred_fallthru
    _
  // Predicated region
  $region34: #{context_normalizing_flow_forward.1} parent=0 // pred_check
    _
  $region35: #{context_normalizing_flow_forward.1} parent=0 // pred_check_branch
    %1049 = sbr.rel (0) target = $region37
  $region36: #{context_normalizing_flow_forward.1} parent=0 // pred_region
    _
  $region37: #{context_normalizing_flow_forward.1} parent=0 // pred_fallthru
    _

</llo_original>
